<compile_context>
chip_gen: v7x
topology: tpu7x:2x2x1
jax: 0.10.0
libtpu: 0.0.40
codegen_flags: <defaults>
</compile_context>

<pallas_src>
import functools
import math

import jax
import jax.numpy as jnp
from jax.experimental import pallas as pl
from jax.experimental.pallas import tpu as pltpu


def _dice_focal_kernel(preds_ref, labels_ref, dice_ref, ce_ref,
                       num_acc, den_acc, *,
                       valid_pixels, pixels_per_tile, needs_mask):
    t = pl.program_id(1)

    @pl.when(t == 0)
    def _init():
        ce_ref[...] = jnp.zeros_like(ce_ref)
        num_acc[...] = jnp.zeros_like(num_acc)
        den_acc[...] = jnp.zeros_like(den_acc)

    x = preds_ref[...].astype(jnp.float32)          # (B, C, T): classes on sublanes, pixels on lanes
    labels = labels_ref[...].astype(jnp.int32)      # (B, 1, T) (int8 on HBM, upcast here)

    if needs_mask:
        # Only the last pixel tile of each image contains padded lanes.  Fold the mask into
        # the labels (sentinel -1 never matches the one-hot) and into an f32 lane_valid
        # factor — avoids any boolean sublane-broadcasts.
        lane_ids = jax.lax.broadcasted_iota(jnp.int32, labels.shape, 2)     # (B, 1, T)
        in_range = (lane_ids + t * pixels_per_tile) < valid_pixels          # (B, 1, T) bool
        labels = jnp.where(in_range, labels, -1)
        lane_valid = in_range.astype(jnp.float32)                           # (B, 1, T)

    # one-hot targets as a boolean mask via sublane-iota compare (depth fixed to C)
    cls_ids = jax.lax.broadcasted_iota(jnp.int32, x.shape, 1)               # (B, C, T)
    onehot = cls_ids == labels                                              # (B, C, T) bool

    # numerically-stable log-softmax pieces (class reductions = short sublane reductions)
    x_max = jnp.max(x, axis=1, keepdims=True)                               # (B, 1, T)
    ex = jnp.exp(x - x_max)                                                 # (B, C, T)
    sumexp = jnp.sum(ex, axis=1, keepdims=True)                             # (B, 1, T)
    logsumexp = jnp.log(sumexp) + x_max                                     # (B, 1, T)
    x_at_label = jnp.sum(jnp.where(onehot, x, 0.0), axis=1, keepdims=True)  # (B, 1, T)

    ce_pix = logsumexp - x_at_label                                         # (B, 1, T)
    if needs_mask:
        ce_pix = ce_pix * lane_valid
    # CE accumulates directly in the resident output block (constant index over t)
    ce_ref[...] += jnp.sum(ce_pix, axis=2, keepdims=True)                   # (B, 1, 1)

    # softmax probs: EUP approx reciprocal + one Newton step (~f32 accuracy, still off the VPU div path)
    r = pl.reciprocal(sumexp, approx=True)
    r = r * (2.0 - sumexp * r)
    if needs_mask:
        r = r * lane_valid          # zeroes probs on padded lanes -> correct psum/inter
    probs = ex * r                                                          # (B, C, T)

    inter = jnp.sum(jnp.where(onehot, probs, 0.0), axis=2, keepdims=True)   # (B, C, 1)
    psum = jnp.sum(probs, axis=2, keepdims=True)                            # (B, C, 1)
    tsum = jnp.sum(jnp.where(onehot, 1.0, 0.0), axis=2, keepdims=True)      # (B, C, 1)
    num_acc[...] += 2.0 * inter
    den_acc[...] += psum + tsum

    @pl.when(t == pl.num_programs(1) - 1)
    def _finalize():
        # per-(batch, class) dice ratio: divide once per image, not per tile
        dice_ref[...] = num_acc[...] / den_acc[...]


def _plan_tiles(n, c, p, elem_budget):
    """Pick (b_tile, p_tile, n_tiles, p_pad) so the f32 preds block per grid step stays
    around `elem_budget` elements (~1 MiB at the default), tiles are 128-lane aligned,
    and small images get batched together instead of degenerating into tiny steps."""
    max_pix = max(128, (elem_budget // max(c, 1)) // 128 * 128)
    n_tiles = max(1, math.ceil(p / max_pix))
    p_tile = ((math.ceil(p / n_tiles) + 127) // 128) * 128
    p_pad = p_tile * n_tiles

    b_cap = max(1, elem_budget // (c * p_tile))
    b_tile = 1
    for d in range(1, n + 1):
        if n % d == 0 and d <= b_cap:
            b_tile = d
    return b_tile, p_tile, n_tiles, p_pad


def dice_focal_loss(preds_nchw, targets_nhw, alpha=0.9, gamma=2,
                    elem_budget=256 * 1024):
    n, c, h, w = preds_nchw.shape
    p = h * w
    b_tile, p_tile, n_tiles, p_pad = _plan_tiles(n, c, p, elem_budget)

    preds = preds_nchw.reshape(n, c, p)            # free reshape, keeps NCHW order
    label_dtype = jnp.int8 if c <= 127 else jnp.int32   # int8 cuts the label HBM stream 4x
    labels = targets_nhw.reshape(n, 1, p).astype(label_dtype)

    needs_mask = p_pad != p
    if needs_mask:
        preds = jnp.pad(preds, ((0, 0), (0, 0), (0, p_pad - p)))
        labels = jnp.pad(labels, ((0, 0), (0, 0), (0, p_pad - p)))

    kernel = functools.partial(
        _dice_focal_kernel,
        valid_pixels=p, pixels_per_tile=p_tile, needs_mask=needs_mask)

    dice_ratios, ce_sums = pl.pallas_call(
        kernel,
        out_shape=(jax.ShapeDtypeStruct((n, c, 1), jnp.float32),
                   jax.ShapeDtypeStruct((n, 1, 1), jnp.float32)),
        grid_spec=pltpu.PrefetchScalarGridSpec(
            num_scalar_prefetch=0,
            grid=(n // b_tile, n_tiles),
            in_specs=[
                pl.BlockSpec((b_tile, c, p_tile), lambda b, t: (b, 0, t)),
                pl.BlockSpec((b_tile, 1, p_tile), lambda b, t: (b, 0, t)),
            ],
            out_specs=[
                pl.BlockSpec((b_tile, c, 1), lambda b, t: (b, 0, 0)),
                pl.BlockSpec((b_tile, 1, 1), lambda b, t: (b, 0, 0)),
            ],
            scratch_shapes=[
                pltpu.VMEM((b_tile, c, 1), jnp.float32),   # dice numerator   (2 * inter)
                pltpu.VMEM((b_tile, c, 1), jnp.float32),   # dice denominator (psum + tsum)
            ],
        ),
        compiler_params=pltpu.CompilerParams(
            # batch axis shardable across TensorCores; pixel axis is a reduction
            dimension_semantics=("parallel", "arbitrary"),
            # working set is ~1 MiB blocks x2 buffers + a few MiB of temps; 32 MiB is the
            # v6e/v7x default and leaves half of v7x's 64 MiB/TC free.
            vmem_limit_bytes=32 * 1024 * 1024,
        ),
    )(preds, labels)

    # tiny finalization in plain JAX (keeps the batch grid axis parallelizable)
    ce_mean = jnp.sum(ce_sums) / float(n * p)
    pt = jnp.exp(-ce_mean)
    focal = alpha * (1.0 - pt) ** gamma * ce_mean
    dice_mean = jnp.mean(dice_ratios)
    return focal + (1.0 - dice_mean)


def _reference(preds_nchw, targets_nhw, alpha=0.9, gamma=2):
    n, c, h, w = preds_nchw.shape
    logits = jnp.transpose(preds_nchw, (0, 2, 3, 1)).reshape(-1, c).astype(jnp.float32)
    labels = targets_nhw.reshape(-1)
    lse = jax.scipy.special.logsumexp(logits, axis=1)
    ce = jnp.mean(lse - logits[jnp.arange(labels.shape[0]), labels])
    pt = jnp.exp(-ce)
    focal = alpha * (1.0 - pt) ** gamma * ce
    probs = jax.nn.softmax(preds_nchw.astype(jnp.float32), axis=1)
    onehot = jax.nn.one_hot(targets_nhw, c, axis=1, dtype=jnp.float32)  # (N, C, H, W)
    dice = 2.0 * jnp.sum(probs * onehot, axis=(2, 3)) / (
        jnp.sum(probs, axis=(2, 3)) + jnp.sum(onehot, axis=(2, 3)))
    return focal + (1.0 - jnp.mean(dice))


if __name__ == "__main__":
    key = jax.random.PRNGKey(0)
    kp, kt, kp2, kt2 = jax.random.split(key, 4)

    # Case 1 (spec-sized): N=2, C=4, H=W=16 -> P=256.  Single pixel tile, both images
    # batched into one grid step (b_tile=2), no padding/masking needed.
    N, C, H, W = 2, 4, 16, 16
    preds = jax.random.normal(kp, (N, C, H, W), dtype=jnp.float32)
    targets = jax.random.randint(kt, (N, H, W), 0, C, dtype=jnp.int32)
    loss = dice_focal_loss(preds, targets, alpha=0.9, gamma=2)
    jax.block_until_ready(loss)
    ref = _reference(preds, targets, alpha=0.9, gamma=2)
    # Newton-refined reciprocal -> tolerance tightened vs. the previous 2e-4.
    assert jnp.allclose(loss, ref, rtol=5e-5, atol=5e-5), (loss, ref)

    # Case 2: exercises the masked-tail + multi-tile accumulation path by shrinking the
    # per-step element budget (H*W=400 -> p_tile=256, 2 tiles, 112 padded lanes).
    N2, C2, H2, W2 = 2, 4, 20, 20
    preds2 = jax.random.normal(kp2, (N2, C2, H2, W2), dtype=jnp.float32)
    targets2 = jax.random.randint(kt2, (N2, H2, W2), 0, C2, dtype=jnp.int32)
    loss2 = dice_focal_loss(preds2, targets2, alpha=0.9, gamma=2, elem_budget=1024)
    jax.block_until_ready(loss2)
    ref2 = _reference(preds2, targets2, alpha=0.9, gamma=2)
    assert jnp.allclose(loss2, ref2, rtol=5e-5, atol=5e-5), (loss2, ref2)

    print("KERNEL_OK")
</pallas_src>

<mosaic_0001>
module attributes {stable_mosaic.version = 11 : i64} {
  func.func @_dice_focal_kernel(%arg0: i32, %arg1: i32, %arg2: memref<2x4x256xf32, #tpu.memory_space<vmem>>, %arg3: memref<2x1x256xi8, #tpu.memory_space<vmem>>, %arg4: memref<2x4x1xf32, #tpu.memory_space<vmem>>, %arg5: memref<2x1x1xf32, #tpu.memory_space<vmem>>, %arg6: memref<2x4x1xf32, #tpu.memory_space<vmem>>, %arg7: memref<2x4x1xf32, #tpu.memory_space<vmem>>) attributes {dimension_semantics = [#tpu.dimension_semantics<parallel>, #tpu.dimension_semantics<arbitrary>], iteration_bounds = array<i64: 1, 1>, scalar_prefetch = 0 : i64, scratch_operands = 2 : i64, tpu.core_type = #tpu.core_type<tc>, window_params = [{transform_indices = @transform_0, window_bounds = array<i64: 2, 4, 256>}, {transform_indices = @transform_1, window_bounds = array<i64: 2, 1, 256>}, {transform_indices = @transform_2, window_bounds = array<i64: 2, 4, 1>}, {transform_indices = @transform_3, window_bounds = array<i64: 2, 1, 1>}]} {
    %c0_i32 = arith.constant 0 : i32
    %0 = arith.cmpi eq, %arg1, %c0_i32 : i32
    %1 = arith.extui %0 : i1 to i32
    %c0_i32_0 = arith.constant 0 : i32
    %2 = arith.cmpi ne, %1, %c0_i32_0 : i32
    scf.if %2 {
      %cst_38 = arith.constant 0.000000e+00 : f32
      %58 = vector.broadcast %cst_38 : f32 to vector<2x1x1xf32>
      %c0_39 = arith.constant 0 : index
      %c0_40 = arith.constant 0 : index
      %c0_41 = arith.constant 0 : index
      %59 = vector.load %arg5[%c0_39, %c0_40, %c0_41] : memref<2x1x1xf32, #tpu.memory_space<vmem>>, vector<2x1x1xf32>
      tpu.vector_store %arg5[%c0_39, %c0_40, %c0_41], %58 {strides = array<i32>} : memref<2x1x1xf32, #tpu.memory_space<vmem>>, vector<2x1x1xf32>,
      %cst_42 = arith.constant 0.000000e+00 : f32
      %60 = vector.broadcast %cst_42 : f32 to vector<2x4x1xf32>
      %c0_43 = arith.constant 0 : index
      %c0_44 = arith.constant 0 : index
      %c0_45 = arith.constant 0 : index
      %61 = vector.load %arg6[%c0_43, %c0_44, %c0_45] : memref<2x4x1xf32, #tpu.memory_space<vmem>>, vector<2x4x1xf32>
      tpu.vector_store %arg6[%c0_43, %c0_44, %c0_45], %60 {strides = array<i32>} : memref<2x4x1xf32, #tpu.memory_space<vmem>>, vector<2x4x1xf32>,
      %cst_46 = arith.constant 0.000000e+00 : f32
      %62 = vector.broadcast %cst_46 : f32 to vector<2x4x1xf32>
      %c0_47 = arith.constant 0 : index
      %c0_48 = arith.constant 0 : index
      %c0_49 = arith.constant 0 : index
      %63 = vector.load %arg7[%c0_47, %c0_48, %c0_49] : memref<2x4x1xf32, #tpu.memory_space<vmem>>, vector<2x4x1xf32>
      tpu.vector_store %arg7[%c0_47, %c0_48, %c0_49], %62 {strides = array<i32>} : memref<2x4x1xf32, #tpu.memory_space<vmem>>, vector<2x4x1xf32>,
    } else {
    }
    %c0 = arith.constant 0 : index
    %c0_1 = arith.constant 0 : index
    %c0_2 = arith.constant 0 : index
    %3 = vector.load %arg2[%c0, %c0_1, %c0_2] : memref<2x4x256xf32, #tpu.memory_space<vmem>>, vector<2x4x256xf32>
    %c0_3 = arith.constant 0 : index
    %c0_4 = arith.constant 0 : index
    %c0_5 = arith.constant 0 : index
    %4 = vector.load %arg3[%c0_3, %c0_4, %c0_5] : memref<2x1x256xi8, #tpu.memory_space<vmem>>, vector<2x1x256xi8>
    %5 = arith.extsi %4 : vector<2x1x256xi8> to vector<2x1x256xi32>
    %6 = tpu.iota {dimensions = array<i32: 1>} : vector<2x4x256xi32>
    %7 = vector.broadcast %5 : vector<2x1x256xi32> to vector<2x4x256xi32>
    %8 = arith.cmpi eq, %6, %7 : vector<2x4x256xi32>
    %cst = arith.constant dense<0xFF800000> : vector<2x256xf32>
    %9 = vector.multi_reduction <maximumf>, %3, %cst [1] : vector<2x4x256xf32> to vector<2x256xf32>
    %10 = vector.shape_cast %9 : vector<2x256xf32> to vector<2x1x256xf32>
    %11 = vector.broadcast %10 : vector<2x1x256xf32> to vector<2x4x256xf32>
    %12 = arith.subf %3, %11 : vector<2x4x256xf32>
    %13 = math.exp %12 : vector<2x4x256xf32>
    %cst_6 = arith.constant dense<0.000000e+00> : vector<2x256xf32>
    %14 = vector.multi_reduction <add>, %13, %cst_6 [1] : vector<2x4x256xf32> to vector<2x256xf32>
    %15 = vector.shape_cast %14 : vector<2x256xf32> to vector<2x1x256xf32>
    %16 = math.log %15 : vector<2x1x256xf32>
    %17 = arith.addf %16, %10 : vector<2x1x256xf32>
    %cst_7 = arith.constant 0.000000e+00 : f32
    %18 = vector.broadcast %cst_7 : f32 to vector<2x4x256xf32>
    %19 = arith.select %8, %3, %18 : vector<2x4x256xi1>, vector<2x4x256xf32>
    %cst_8 = arith.constant dense<0.000000e+00> : vector<2x256xf32>
    %20 = vector.multi_reduction <add>, %19, %cst_8 [1] : vector<2x4x256xf32> to vector<2x256xf32>
    %21 = vector.shape_cast %20 : vector<2x256xf32> to vector<2x1x256xf32>
    %22 = arith.subf %17, %21 : vector<2x1x256xf32>
    %c0_9 = arith.constant 0 : index
    %c0_10 = arith.constant 0 : index
    %c0_11 = arith.constant 0 : index
    %23 = vector.load %arg5[%c0_9, %c0_10, %c0_11] : memref<2x1x1xf32, #tpu.memory_space<vmem>>, vector<2x1x1xf32>
    %cst_12 = arith.constant dense<0.000000e+00> : vector<2x1xf32>
    %24 = vector.multi_reduction <add>, %22, %cst_12 [2] : vector<2x1x256xf32> to vector<2x1xf32>
    %25 = vector.shape_cast %24 : vector<2x1xf32> to vector<2x1x1xf32>
    %26 = arith.addf %23, %25 : vector<2x1x1xf32>
    %c0_13 = arith.constant 0 : index
    %c0_14 = arith.constant 0 : index
    %c0_15 = arith.constant 0 : index
    %27 = vector.load %arg5[%c0_13, %c0_14, %c0_15] : memref<2x1x1xf32, #tpu.memory_space<vmem>>, vector<2x1x1xf32>
    tpu.vector_store %arg5[%c0_13, %c0_14, %c0_15], %26 {strides = array<i32>} : memref<2x1x1xf32, #tpu.memory_space<vmem>>, vector<2x1x1xf32>,
    %28 = tpu.reciprocal %15 {approx = true} : vector<2x1x256xf32> -> vector<2x1x256xf32>
    %29 = arith.mulf %15, %28 : vector<2x1x256xf32>
    %cst_16 = arith.constant 2.000000e+00 : f32
    %30 = vector.broadcast %cst_16 : f32 to vector<2x1x256xf32>
    %31 = arith.subf %30, %29 : vector<2x1x256xf32>
    %32 = arith.mulf %28, %31 : vector<2x1x256xf32>
    %33 = vector.broadcast %32 : vector<2x1x256xf32> to vector<2x4x256xf32>
    %34 = arith.mulf %13, %33 : vector<2x4x256xf32>
    %cst_17 = arith.constant 0.000000e+00 : f32
    %35 = vector.broadcast %cst_17 : f32 to vector<2x4x256xf32>
    %36 = arith.select %8, %34, %35 : vector<2x4x256xi1>, vector<2x4x256xf32>
    %cst_18 = arith.constant dense<0.000000e+00> : vector<2x4xf32>
    %37 = vector.multi_reduction <add>, %36, %cst_18 [2] : vector<2x4x256xf32> to vector<2x4xf32>
    %38 = vector.shape_cast %37 : vector<2x4xf32> to vector<2x4x1xf32>
    %cst_19 = arith.constant dense<0.000000e+00> : vector<2x4xf32>
    %39 = vector.multi_reduction <add>, %34, %cst_19 [2] : vector<2x4x256xf32> to vector<2x4xf32>
    %40 = vector.shape_cast %39 : vector<2x4xf32> to vector<2x4x1xf32>
    %cst_20 = arith.constant 1.000000e+00 : f32
    %cst_21 = arith.constant 0.000000e+00 : f32
    %41 = vector.broadcast %cst_20 : f32 to vector<2x4x256xf32>
    %42 = vector.broadcast %cst_21 : f32 to vector<2x4x256xf32>
    %43 = arith.select %8, %41, %42 : vector<2x4x256xi1>, vector<2x4x256xf32>
    %cst_22 = arith.constant dense<0.000000e+00> : vector<2x4xf32>
    %44 = vector.multi_reduction <add>, %43, %cst_22 [2] : vector<2x4x256xf32> to vector<2x4xf32>
    %45 = vector.shape_cast %44 : vector<2x4xf32> to vector<2x4x1xf32>
    %c0_23 = arith.constant 0 : index
    %c0_24 = arith.constant 0 : index
    %c0_25 = arith.constant 0 : index
    %46 = vector.load %arg6[%c0_23, %c0_24, %c0_25] : memref<2x4x1xf32, #tpu.memory_space<vmem>>, vector<2x4x1xf32>
    %cst_26 = arith.constant 2.000000e+00 : f32
    %47 = vector.broadcast %cst_26 : f32 to vector<2x4x1xf32>
    %48 = arith.mulf %47, %38 : vector<2x4x1xf32>
    %49 = arith.addf %46, %48 : vector<2x4x1xf32>
    %c0_27 = arith.constant 0 : index
    %c0_28 = arith.constant 0 : index
    %c0_29 = arith.constant 0 : index
    %50 = vector.load %arg6[%c0_27, %c0_28, %c0_29] : memref<2x4x1xf32, #tpu.memory_space<vmem>>, vector<2x4x1xf32>
    tpu.vector_store %arg6[%c0_27, %c0_28, %c0_29], %49 {strides = array<i32>} : memref<2x4x1xf32, #tpu.memory_space<vmem>>, vector<2x4x1xf32>,
    %c0_30 = arith.constant 0 : index
    %c0_31 = arith.constant 0 : index
    %c0_32 = arith.constant 0 : index
    %51 = vector.load %arg7[%c0_30, %c0_31, %c0_32] : memref<2x4x1xf32, #tpu.memory_space<vmem>>, vector<2x4x1xf32>
    %52 = arith.addf %40, %45 : vector<2x4x1xf32>
    %53 = arith.addf %51, %52 : vector<2x4x1xf32>
    %c0_33 = arith.constant 0 : index
    %c0_34 = arith.constant 0 : index
    %c0_35 = arith.constant 0 : index
    %54 = vector.load %arg7[%c0_33, %c0_34, %c0_35] : memref<2x4x1xf32, #tpu.memory_space<vmem>>, vector<2x4x1xf32>
    tpu.vector_store %arg7[%c0_33, %c0_34, %c0_35], %53 {strides = array<i32>} : memref<2x4x1xf32, #tpu.memory_space<vmem>>, vector<2x4x1xf32>,
    %c0_i32_36 = arith.constant 0 : i32
    %55 = arith.cmpi eq, %arg1, %c0_i32_36 : i32
    %56 = arith.extui %55 : i1 to i32
    %c0_i32_37 = arith.constant 0 : i32
    %57 = arith.cmpi ne, %56, %c0_i32_37 : i32
    scf.if %57 {
      %c0_38 = arith.constant 0 : index
      %c0_39 = arith.constant 0 : index
      %c0_40 = arith.constant 0 : index
      %58 = vector.load %arg6[%c0_38, %c0_39, %c0_40] : memref<2x4x1xf32, #tpu.memory_space<vmem>>, vector<2x4x1xf32>
      %c0_41 = arith.constant 0 : index
      %c0_42 = arith.constant 0 : index
      %c0_43 = arith.constant 0 : index
      %59 = vector.load %arg7[%c0_41, %c0_42, %c0_43] : memref<2x4x1xf32, #tpu.memory_space<vmem>>, vector<2x4x1xf32>
      %60 = arith.divf %58, %59 : vector<2x4x1xf32>
      %c0_44 = arith.constant 0 : index
      %c0_45 = arith.constant 0 : index
      %c0_46 = arith.constant 0 : index
      %61 = vector.load %arg4[%c0_44, %c0_45, %c0_46] : memref<2x4x1xf32, #tpu.memory_space<vmem>>, vector<2x4x1xf32>
      tpu.vector_store %arg4[%c0_44, %c0_45, %c0_46], %60 {strides = array<i32>} : memref<2x4x1xf32, #tpu.memory_space<vmem>>, vector<2x4x1xf32>,
    } else {
    }
    return
  }
  func.func @transform_0(%arg0: i32, %arg1: i32) -> (i32, i32, i32) {
    %c0_i32 = arith.constant 0 : i32
    %c0_i32_0 = arith.constant 0 : i32
    return %arg0, %c0_i32, %arg1 : i32, i32, i32
  }
  func.func @transform_1(%arg0: i32, %arg1: i32) -> (i32, i32, i32) {
    %c0_i32 = arith.constant 0 : i32
    %c0_i32_0 = arith.constant 0 : i32
    return %arg0, %c0_i32, %arg1 : i32, i32, i32
  }
  func.func @transform_2(%arg0: i32, %arg1: i32) -> (i32, i32, i32) {
    %c0_i32 = arith.constant 0 : i32
    %c0_i32_0 = arith.constant 0 : i32
    %c0_i32_1 = arith.constant 0 : i32
    return %arg0, %c0_i32, %c0_i32_0 : i32, i32, i32
  }
  func.func @transform_3(%arg0: i32, %arg1: i32) -> (i32, i32, i32) {
    %c0_i32 = arith.constant 0 : i32
    %c0_i32_0 = arith.constant 0 : i32
    %c0_i32_1 = arith.constant 0 : i32
    return %arg0, %c0_i32, %c0_i32_0 : i32, i32, i32
  }
}

</mosaic_0001>

<llo_original>
// kernel: tpu_custom_call.1
$region0: #{tpu_custom_call.1}
  #allocation0 [shape = 'u32[]', space=smem, size = 0x4, offset = 0x4, fixed_abs, tag = 'smem constant byte address 0x4 - core index']
  #allocation1 [shape = 'u32[144,128]{1,0:T(1,128)}', space=vmem, size = 0x12000, scoped, tag = 'internal scratch']
  #allocation2 [shape = 'f32[2,4,1]{2,1,0:T(4,128)}', space=vmem, size = 0x1000, scoped, tag = 'scratch operand']
  #allocation3 [shape = 'f32[2,4,1]{2,1,0:T(4,128)}', space=vmem, size = 0x1000, scoped, tag = 'scratch operand']
  %s0 = inlined_call_operand.hbm [shape: f32[2,4,256], index: 0, kind: input, shape index: {}]
  %s1 = inlined_call_operand.vmem [shape: s8[2,1,256], index: 1, kind: input, shape index: {}]
  %s2 = inlined_call_operand.vmem [shape: f32[2,4,1], index: 2, kind: output, shape index: {0}]
  %s3 = inlined_call_operand.vmem [shape: f32[2,1,1], index: 3, kind: output, shape index: {1}]
  %4 = xla_tuple %s2, %s3
  %s5 = sld [smem:[#allocation0]]
  $region38: #{tpu_custom_call.1} parent=0
    _
  %s7 = ssub.s32 1, %s5
  %s8 = scalar_select 0, %s7, %s5
  $region1: #{tpu_custom_call.1} parent=0
    #allocation4 [shape = 'u8[8192]{0}', space=vmem, size = 0x2000, scoped, tag = 'input window, operand 0, single buffered']
    #allocation5 [shape = 's32[1]{0}', space=sflag, size = 0x4, scoped, tag = 'scoped memory for tpu_custom_call.1']
    %9 = vsyncpa [#allocation5], 0
    // Predicated region
    $region2: #{tpu_custom_call.1} parent=1 // pred_check
      _
    $region3: #{tpu_custom_call.1} parent=1 // pred_check_branch
      %11 = sbr.rel (0) target = $region5
    $region4: #{tpu_custom_call.1} parent=1 // pred_region
      %s13 = ssub.s32 256, 256
      %14 = vsyncadd [#allocation5], %s13
      %s15 = sshll.u32 [#allocation4], 4
      %s16 = int_to_ptr.vmem [resolvable:$true] %s15
      %21 = dma.hbm_to_vmem [thread:$0]  %s0, 256, %s16, [#allocation5], 128, 128, 8
    $region5: #{tpu_custom_call.1} parent=1 // pred_fallthru
      _
    // Predicated region
    $region6: #{tpu_custom_call.1} parent=1 // pred_check
      _
    $region7: #{tpu_custom_call.1} parent=1 // pred_check_branch
      %23 = sbr.rel (0) target = $region9
    $region8: #{tpu_custom_call.1} parent=1 // pred_region
      _
    $region9: #{tpu_custom_call.1} parent=1 // pred_fallthru
      _
    // Predicated region
    $region10: #{tpu_custom_call.1} parent=1 // pred_check
      _
    $region11: #{tpu_custom_call.1} parent=1 // pred_check_branch
      %25 = sbr.rel (0) target = $region13
    $region12: #{tpu_custom_call.1} parent=1 // pred_region
      %26 = dma.done [#allocation5], 256
    $region13: #{tpu_custom_call.1} parent=1 // pred_fallthru
      _
    %p27 = scmp.eq.s32.totalorder 0, 0
    // Predicated region
    $region14: #{tpu_custom_call.1} parent=1 // pred_check
      %p28 = pneg %p27
    $region15: #{tpu_custom_call.1} parent=1 // pred_check_branch
      %30 = sbr.rel (%p28) target = $region17
    $region16: #{tpu_custom_call.1} parent=1 // pred_region
      %vm31 = vcmask 0
      %32 = vst.msk [vmem:[%s3] sm:$0x1] %vm31, 0.0
      %33 = vst.msk [vmem:[%s3 + $0x1] sm:$0x1] %vm31, 0.0
      %vm34 = vcmask 3072
      %35 = vst.msk [vmem:[#allocation2] sm:$0xf] %vm34, 0.0
      %36 = vst.msk [vmem:[#allocation2 + $0x4] sm:$0xf] %vm34, 0.0
      %37 = vst.msk [vmem:[#allocation3] sm:$0xf] %vm34, 0.0
      %38 = vst.msk [vmem:[#allocation3 + $0x4] sm:$0xf] %vm34, 0.0
    $region17: #{tpu_custom_call.1} parent=1 // pred_fallthru
      _
    %v39 = vld [vmem:[#allocation4] sm:$0xff]
    %v40 = vld [vmem:[#allocation4 + $0x8] sm:$0xff]
    %v41 = vld [vmem:[%s1] sm:$0x3]
    %v42 = vld [vmem:[%s1 + $0x2] sm:$0x3]
    %v43 = vunpack.c.0.s8 %v41
    %v44 = vunpack.c.0.s8 %v42
    %v45 = vlaneseq
    %v46 = vshrl.u32 %v45, 7
    %v47 = vlaneseq
    %v48 = vshrl.u32 %v47, 7
    %v49 = vsub.s32 0, %v48
    %v50 = vrot.slane %v43, %v49
    %v51 = vlaneseq
    %v52 = vshrl.u32 %v51, 7
    %v53 = vsub.s32 4, %v52
    %v54 = vrot.slane %v43, %v53
    %v55 = vlaneseq
    %v56 = vshrl.u32 %v55, 7
    %v57 = vsub.s32 0, %v56
    %v58 = vrot.slane %v44, %v57
    %v59 = vlaneseq
    %v60 = vshrl.u32 %v59, 7
    %v61 = vsub.s32 4, %v60
    %v62 = vrot.slane %v44, %v61
    %v63 = vlaneseq
    %v64 = vshrl.u32 %v63, 7
    %v65 = vsub.s32 0, %v64
    %v66 = vrot.slane %v50, %v65
    %v67 = vlaneseq
    %v68 = vshrl.u32 %v67, 7
    %v69 = vsub.s32 0, %v68
    %v70 = vrot.slane %v54, %v69
    %v71 = vlaneseq
    %v72 = vshrl.u32 %v71, 7
    %v73 = vsub.s32 0, %v72
    %v74 = vrot.slane %v58, %v73
    %v75 = vlaneseq
    %v76 = vshrl.u32 %v75, 7
    %v77 = vsub.s32 0, %v76
    %v78 = vrot.slane %v62, %v77
    %vm79 = vcmp.eq.s32.totalorder %v46, %v66
    %vm80 = vcmp.eq.s32.totalorder %v46, %v70
    %vm81 = vcmp.eq.s32.totalorder %v46, %v74
    %vm82 = vcmp.eq.s32.totalorder %v46, %v78
    %v85 = vcombine.high %v39, %v39
    %v86 = vcombine.high %v40, %v40
    %vm89 = vcmask 1043456
    %v90 = vsel %vm89, %v39, -inf
    %v91 = vrot.slane %v90, 4
    %v92 = vmax.f32 %v90, %v91
    %v93 = vrot.slane %v92, 2
    %v94 = vmax.f32 %v92, %v93
    %v95 = vrot.slane %v94, 1
    %v96 = vmax.f32 %v94, %v95
    %v97 = vsel %vm89, %v85, -inf
    %v98 = vrot.slane %v97, 4
    %v99 = vmax.f32 %v97, %v98
    %v100 = vrot.slane %v99, 2
    %v101 = vmax.f32 %v99, %v100
    %v102 = vrot.slane %v101, 1
    %v103 = vmax.f32 %v101, %v102
    %v104 = vsel %vm89, %v40, -inf
    %v105 = vrot.slane %v104, 4
    %v106 = vmax.f32 %v104, %v105
    %v107 = vrot.slane %v106, 2
    %v108 = vmax.f32 %v106, %v107
    %v109 = vrot.slane %v108, 1
    %v110 = vmax.f32 %v108, %v109
    %v111 = vsel %vm89, %v86, -inf
    %v112 = vrot.slane %v111, 4
    %v113 = vmax.f32 %v111, %v112
    %v114 = vrot.slane %v113, 2
    %v115 = vmax.f32 %v113, %v114
    %v116 = vrot.slane %v115, 1
    %v117 = vmax.f32 %v115, %v116
    %v122 = vcombine.low %v96, %v103
    %v123 = vcombine.low %v110, %v117
    %v126 = vsub.f32 %v39, %v122
    %v127 = vsub.f32 %v40, %v123
    %v128 = vmul.f32 %v126, 1.442695
    %v129 = vpow.pop %v128
    %v130 = vmul.f32 %v127, 1.442695
    %v131 = vpow.pop %v130
    %v134 = vcombine.high %v129, %v129
    %v135 = vcombine.high %v131, %v131
    %v138 = vsel %vm89, %v129, 0.0
    %v139 = vrot.slane %v138, 4
    %v140 = vadd.f32 %v138, %v139
    %v141 = vrot.slane %v140, 2
    %v142 = vadd.f32 %v140, %v141
    %v143 = vrot.slane %v142, 1
    %v144 = vadd.f32 %v142, %v143
    %v145 = vsel %vm89, %v134, 0.0
    %v146 = vrot.slane %v145, 4
    %v147 = vadd.f32 %v145, %v146
    %v148 = vrot.slane %v147, 2
    %v149 = vadd.f32 %v147, %v148
    %v150 = vrot.slane %v149, 1
    %v151 = vadd.f32 %v149, %v150
    %v152 = vsel %vm89, %v131, 0.0
    %v153 = vrot.slane %v152, 4
    %v154 = vadd.f32 %v152, %v153
    %v155 = vrot.slane %v154, 2
    %v156 = vadd.f32 %v154, %v155
    %v157 = vrot.slane %v156, 1
    %v158 = vadd.f32 %v156, %v157
    %v159 = vsel %vm89, %v135, 0.0
    %v160 = vrot.slane %v159, 4
    %v161 = vadd.f32 %v159, %v160
    %v162 = vrot.slane %v161, 2
    %v163 = vadd.f32 %v161, %v162
    %v164 = vrot.slane %v163, 1
    %v165 = vadd.f32 %v163, %v164
    %v166 = vlog2.pop %v144
    %v167 = vmul.f32 %v166, 0.6931472
    %v168 = vlog2.pop %v151
    %v169 = vmul.f32 %v168, 0.6931472
    %v170 = vlog2.pop %v158
    %v171 = vmul.f32 %v170, 0.6931472
    %v172 = vlog2.pop %v165
    %v173 = vmul.f32 %v172, 0.6931472
    %v174 = vadd.f32 %v167, %v96
    %v175 = vadd.f32 %v169, %v103
    %v176 = vadd.f32 %v171, %v110
    %v177 = vadd.f32 %v173, %v117
    %v178 = vsel %vm79, %v39, 0.0
    %v179 = vsel %vm80, %v85, 0.0
    %v180 = vsel %vm81, %v40, 0.0
    %v181 = vsel %vm82, %v86, 0.0
    %v182 = vsel %vm89, %v178, 0.0
    %v183 = vrot.slane %v182, 4
    %v184 = vadd.f32 %v182, %v183
    %v185 = vrot.slane %v184, 2
    %v186 = vadd.f32 %v184, %v185
    %v187 = vrot.slane %v186, 1
    %v188 = vadd.f32 %v186, %v187
    %v189 = vsel %vm89, %v179, 0.0
    %v190 = vrot.slane %v189, 4
    %v191 = vadd.f32 %v189, %v190
    %v192 = vrot.slane %v191, 2
    %v193 = vadd.f32 %v191, %v192
    %v194 = vrot.slane %v193, 1
    %v195 = vadd.f32 %v193, %v194
    %v196 = vsel %vm89, %v180, 0.0
    %v197 = vrot.slane %v196, 4
    %v198 = vadd.f32 %v196, %v197
    %v199 = vrot.slane %v198, 2
    %v200 = vadd.f32 %v198, %v199
    %v201 = vrot.slane %v200, 1
    %v202 = vadd.f32 %v200, %v201
    %v203 = vsel %vm89, %v181, 0.0
    %v204 = vrot.slane %v203, 4
    %v205 = vadd.f32 %v203, %v204
    %v206 = vrot.slane %v205, 2
    %v207 = vadd.f32 %v205, %v206
    %v208 = vrot.slane %v207, 1
    %v209 = vadd.f32 %v207, %v208
    %v210 = vsub.f32 %v174, %v188
    %v211 = vsub.f32 %v175, %v195
    %v212 = vsub.f32 %v176, %v202
    %v213 = vsub.f32 %v177, %v209
    %v214 = vld [vmem:[%s3] sm:$0x1]
    %v215 = vld [vmem:[%s3 + $0x1] sm:$0x1]
    %v216 = vadd.f32 %v210, %v211
    %217 = vadd.xlane.f32.xlu0 %v216
    %v218 = vpop.xlane.xlu0 %217
    %v219 = vadd.f32 %v212, %v213
    %220 = vadd.xlane.f32.xlu0 %v219
    %v221 = vpop.xlane.xlu0 %220
    %v222 = vadd.f32 %v214, %v218
    %v223 = vadd.f32 %v215, %v221
    %vm224 = vcmask 0
    %225 = vst.msk [vmem:[%s3] sm:$0x1] %vm224, %v222
    %226 = vst.msk [vmem:[%s3 + $0x1] sm:$0x1] %vm224, %v223
    %v227 = vrcp.pop %v144
    %v228 = vrcp.pop %v151
    %v229 = vrcp.pop %v158
    %v230 = vrcp.pop %v165
    %v231 = vmul.f32 %v144, %v227
    %v232 = vmul.f32 %v151, %v228
    %v233 = vmul.f32 %v158, %v229
    %v234 = vmul.f32 %v165, %v230
    %v235 = vsub.f32 2.0, %v231
    %v236 = vsub.f32 2.0, %v232
    %v237 = vsub.f32 2.0, %v233
    %v238 = vsub.f32 2.0, %v234
    %v239 = vmul.f32 %v227, %v235
    %v240 = vmul.f32 %v228, %v236
    %v241 = vmul.f32 %v229, %v237
    %v242 = vmul.f32 %v230, %v238
    %v247 = vcombine.low %v239, %v240
    %v248 = vcombine.low %v241, %v242
    %v251 = vmul.f32 %v129, %v247
    %v252 = vmul.f32 %v131, %v248
    %v255 = vcombine.high %v251, %v251
    %v256 = vcombine.high %v252, %v252
    %v259 = vsel %vm79, %v251, 0.0
    %v260 = vsel %vm80, %v255, 0.0
    %v261 = vsel %vm81, %v252, 0.0
    %v262 = vsel %vm82, %v256, 0.0
    %v263 = vsel %vm89, %v259, 0.0
    %v264 = vsel %vm89, %v260, 0.0
    %v265 = vadd.f32 %v263, %v264
    %266 = vadd.xlane.f32.xlu0 %v265
    %v267 = vpop.xlane.xlu0 %266
    %v268 = vsel %vm89, %v261, 0.0
    %v269 = vsel %vm89, %v262, 0.0
    %v270 = vadd.f32 %v268, %v269
    %271 = vadd.xlane.f32.xlu0 %v270
    %v272 = vpop.xlane.xlu0 %271
    %v273 = vsel %vm89, %v251, 0.0
    %v274 = vsel %vm89, %v255, 0.0
    %v275 = vadd.f32 %v273, %v274
    %276 = vadd.xlane.f32.xlu0 %v275
    %v277 = vpop.xlane.xlu0 %276
    %v278 = vsel %vm89, %v252, 0.0
    %v279 = vsel %vm89, %v256, 0.0
    %v280 = vadd.f32 %v278, %v279
    %281 = vadd.xlane.f32.xlu0 %v280
    %v282 = vpop.xlane.xlu0 %281
    %v283 = vsel %vm79, 1.0, 0.0
    %v284 = vsel %vm80, 1.0, 0.0
    %v285 = vsel %vm81, 1.0, 0.0
    %v286 = vsel %vm82, 1.0, 0.0
    %v287 = vsel %vm89, %v283, 0.0
    %v288 = vsel %vm89, %v284, 0.0
    %v289 = vadd.f32 %v287, %v288
    %290 = vadd.xlane.f32.xlu0 %v289
    %v291 = vpop.xlane.xlu0 %290
    %v292 = vsel %vm89, %v285, 0.0
    %v293 = vsel %vm89, %v286, 0.0
    %v294 = vadd.f32 %v292, %v293
    %295 = vadd.xlane.f32.xlu0 %v294
    %v296 = vpop.xlane.xlu0 %295
    %v297 = vld [vmem:[#allocation2] sm:$0xf]
    %v298 = vld [vmem:[#allocation2 + $0x4] sm:$0xf]
    %v299 = vmul.f32 %v267, 2.0
    %v300 = vmul.f32 %v272, 2.0
    %v301 = vadd.f32 %v297, %v299
    %v302 = vadd.f32 %v298, %v300
    %vm303 = vcmask 3072
    %304 = vst.msk [vmem:[#allocation2] sm:$0xf] %vm303, %v301
    %305 = vst.msk [vmem:[#allocation2 + $0x4] sm:$0xf] %vm303, %v302
    %v306 = vld [vmem:[#allocation3] sm:$0xf]
    %v307 = vld [vmem:[#allocation3 + $0x4] sm:$0xf]
    %v308 = vadd.f32 %v277, %v291
    %v309 = vadd.f32 %v282, %v296
    %v310 = vadd.f32 %v306, %v308
    %v311 = vadd.f32 %v307, %v309
    %312 = vst.msk [vmem:[#allocation3] sm:$0xf] %vm303, %v310
    %313 = vst.msk [vmem:[#allocation3 + $0x4] sm:$0xf] %vm303, %v311
    // Predicated region
    $region18: #{tpu_custom_call.1} parent=1 // pred_check
      %p314 = pneg %p27
    $region19: #{tpu_custom_call.1} parent=1 // pred_check_branch
      %316 = sbr.rel (%p314) target = $region21
    $region20: #{tpu_custom_call.1} parent=1 // pred_region
      %v317 = vld [vmem:[#allocation2] sm:$0xf]
      %v318 = vld [vmem:[#allocation2 + $0x4] sm:$0xf]
      %v319 = vld [vmem:[#allocation3] sm:$0xf]
      %v320 = vld [vmem:[#allocation3 + $0x4] sm:$0xf]
      %v321 = vrcp.pop %v319
      %v322 = vmul.f32 %v317, %v321
      %v323 = vrcp.pop %v320
      %v324 = vmul.f32 %v318, %v323
      %325 = vst.msk [vmem:[%s2] sm:$0xf] %vm303, %v322
      %326 = vst.msk [vmem:[%s2 + $0x4] sm:$0xf] %vm303, %v324
    $region21: #{tpu_custom_call.1} parent=1 // pred_fallthru
      _
    // Predicated region
    $region22: #{tpu_custom_call.1} parent=1 // pred_check
      _
    $region23: #{tpu_custom_call.1} parent=1 // pred_check_branch
      %328 = sbr.rel (0) target = $region25
    $region24: #{tpu_custom_call.1} parent=1 // pred_region
      _
    $region25: #{tpu_custom_call.1} parent=1 // pred_fallthru
      _
    // Predicated region
    $region26: #{tpu_custom_call.1} parent=1 // pred_check
      _
    $region27: #{tpu_custom_call.1} parent=1 // pred_check_branch
      %330 = sbr.rel (0) target = $region29
    $region28: #{tpu_custom_call.1} parent=1 // pred_region
      _
    $region29: #{tpu_custom_call.1} parent=1 // pred_fallthru
      _
    // Predicated region
    $region30: #{tpu_custom_call.1} parent=1 // pred_check
      _
    $region31: #{tpu_custom_call.1} parent=1 // pred_check_branch
      %332 = sbr.rel (0) target = $region33
    $region32: #{tpu_custom_call.1} parent=1 // pred_region
      _
    $region33: #{tpu_custom_call.1} parent=1 // pred_fallthru
      _
    // Predicated region
    $region34: #{tpu_custom_call.1} parent=1 // pred_check
      _
    $region35: #{tpu_custom_call.1} parent=1 // pred_check_branch
      %334 = sbr.rel (0) target = $region37
    $region36: #{tpu_custom_call.1} parent=1 // pred_region
      _
    $region37: #{tpu_custom_call.1} parent=1 // pred_fallthru
      _
    %335 = vsyncpa [#allocation5], 1

</llo_original>
